<compile_context>
chip_gen: v7x
topology: tpu7x:2x2x1
jax: 0.10.0
libtpu: 0.0.40
codegen_flags: <defaults>
</compile_context>

<pallas_src>
import math

import jax
import jax.numpy as jnp
import numpy as np
from jax.experimental import pallas as pl
from jax.experimental.pallas import tpu as pltpu


# ----------------------------------------------------------------------------
# Kernel: grads = y_flat @ Gt streamed over K tiles (f32 accumulate), emitting
# the per-N-slice sum of squares of grads.  Grid = (nj parallel, nk arbitrary).
# ----------------------------------------------------------------------------
def _plp_kernel(y_ref, gt_ref, sq_ref, acc_ref):
    k = pl.program_id(1)

    @pl.when(k == 0)
    def _():
        acc_ref[...] = jnp.zeros_like(acc_ref)

    # Inputs stay in their native dtype (f32 or bf16); MXU accumulates in f32.
    acc_ref[...] += jnp.dot(y_ref[...], gt_ref[...],
                            preferred_element_type=jnp.float32)

    @pl.when(k == pl.num_programs(1) - 1)
    def _():
        g = acc_ref[...]                                      # [B, tn] f32
        sq_ref[0] = jnp.sum(g * g, axis=1, keepdims=True)     # [B, 1]


# ----------------------------------------------------------------------------
# Sizing helpers.
# ----------------------------------------------------------------------------
def _round_up(x, m):
    return ((x + m - 1) // m) * m


def _vmem_limit_bytes():
    """Scoped VMEM budget: half of physical VMEM (64 MiB/core v7x, 128 MiB v5e/v6e)."""
    try:
        cap = pltpu.get_tpu_info().vmem_capacity_bytes
    except Exception:
        cap = 64 << 20
    return int(min(cap // 2, 96 << 20))


def _num_tensorcores():
    """Best-effort TensorCore count (2 on v7x, 1 on v5e/v6e); falls back to 1."""
    try:
        info = pltpu.get_tpu_info()
        for attr in ("num_cores", "core_count", "num_tensorcores", "tensorcore_count"):
            v = getattr(info, attr, None)
            if v:
                return int(v)
    except Exception:
        pass
    try:
        return int(getattr(jax.devices()[0], "num_cores", 1) or 1)
    except Exception:
        return 1


def _choose_block_k(K, tn, gt_itemsize, y_itemsize, B, vmem_limit, requested=None):
    """Multiple-of-128 K tile so 2x(Gt tile + y tile) + acc ~ 70-80% of vmem_limit."""
    k_ceil = _round_up(K, 128)
    if requested is not None:
        tk = int(requested)
    else:
        budget = max(1 << 20, vmem_limit // 3)           # per (Gt + y) tile pair
        per_row = tn * gt_itemsize + B * y_itemsize
        tk = (budget // max(1, per_row)) // 128 * 128
    tk = max(128, min(tk, k_ceil))
    return (tk // 128) * 128


# ----------------------------------------------------------------------------
# Wrapper: functional equivalent of PathLengthPenalty.forward(w, x).
# Returns (loss, new_exp_sum_a, new_steps).  The noise `y` (torch.randn in the
# original) is sampled outside and passed in; `gt` encodes the (linear)
# generator so the gradient w.r.t. w is computed analytically in-kernel.
# ----------------------------------------------------------------------------
def path_length_penalty(w, x, y, gt, steps, exp_sum_a, *, beta,
                        block_k=None, n_splits=None, compute_dtype=None):
    B, L, D = w.shape
    N = L * D
    image_size = x.shape[2] * x.shape[3]
    K = x.shape[1] * image_size
    assert gt.shape == (K, N), (gt.shape, (K, N))

    y_flat = y.reshape(B, K)
    if compute_dtype is not None:
        # Kernel is HBM-bound on Gt bytes; bf16 halves the stream, f32 accumulate.
        y_flat = y_flat.astype(compute_dtype)
        gt = gt.astype(compute_dtype)

    # N split across TensorCores (v7x megacore): each core streams a disjoint
    # slice of Gt and emits its own partial sum-of-squares.
    if n_splits is None:
        n_splits = 2 if (_num_tensorcores() >= 2 and N % 2 == 0
                         and (N // 2) % 128 == 0) else 1
    nj = int(n_splits)
    assert nj >= 1 and N % nj == 0, (N, nj)
    tn = N // nj
    assert nj == 1 or tn % 128 == 0, "each N slice must stay lane-aligned"

    gt_item = jnp.dtype(gt.dtype).itemsize
    y_item = jnp.dtype(y_flat.dtype).itemsize
    vmem_limit = _vmem_limit_bytes()
    tk = _choose_block_k(K, tn, gt_item, y_item, B, vmem_limit, requested=block_k)

    # Zero-pad K up to a tile multiple: padded Gt rows / y columns contribute 0
    # to the dot, so odd C*H*W never falls back to a whole-K VMEM window.
    nk = pl.cdiv(K, tk)
    K_pad = nk * tk
    if K_pad != K:
        y_flat = jnp.pad(y_flat, ((0, 0), (0, K_pad - K)))
        gt = jnp.pad(gt, ((0, K_pad - K), (0, 0)))

    cost = pl.CostEstimate(
        flops=2 * B * K_pad * N,
        transcendentals=0,
        bytes_accessed=(K_pad * N * gt_item + B * K_pad * y_item + nj * B * 4))

    sq_partial = pl.pallas_call(
        _plp_kernel,
        grid=(nj, nk),
        in_specs=[
            pl.BlockSpec((B, tk), lambda j, k: (0, k)),    # y tile   [B, tk]
            pl.BlockSpec((tk, tn), lambda j, k: (k, j)),   # Gt tile  [tk, N/nj]
        ],
        out_specs=pl.BlockSpec((1, B, 1), lambda j, k: (j, 0, 0)),
        out_shape=jax.ShapeDtypeStruct((nj, B, 1), jnp.float32),
        scratch_shapes=[pltpu.VMEM((B, tn), jnp.float32)],  # grads accumulator
        compiler_params=pltpu.CompilerParams(
            dimension_semantics=("parallel", "arbitrary"),  # K is a reduction
            vmem_limit_bytes=vmem_limit),
        cost_estimate=cost,
    )(y_flat, gt)

    # --- O(B) scalar epilogue in the wrapper: norm, EMA, loss. ---------------
    sq = jnp.sum(sq_partial[:, :, 0], axis=0)                       # [B]
    # norm_b = sqrt( sum_{L*D} (grads/sqrt(HW))**2 / L ) = sqrt(sq/(L*HW))
    norm = jnp.sqrt(sq * jnp.float32(1.0 / (L * image_size)))
    mean_norm = jnp.mean(norm)

    steps_f = jnp.asarray(steps, jnp.float32)
    exp_f = jnp.asarray(exp_sum_a, jnp.float32)
    is_warm = steps_f > 0.0
    denom = jnp.where(is_warm, 1.0 - jnp.float32(beta) ** steps_f, 1.0)
    a = exp_f / denom
    loss = jnp.where(is_warm, jnp.mean((norm - a) ** 2), jnp.float32(0.0))

    # exp_sum_a.mul_(beta).add_(mean, alpha=1-beta); steps.add_(1.0)
    new_exp = jnp.float32(beta) * exp_f + jnp.float32(1.0 - beta) * mean_norm
    # TODO(synk): carry steps as int32 for exactness past ~1.6e7 iterations.
    new_steps = steps_f + 1.0
    return loss, new_exp, new_steps


# ----------------------------------------------------------------------------
# Pure-JAX reference using real autodiff through the synthetic generator.
# ----------------------------------------------------------------------------
def reference(w, x, y, gt, steps, exp_sum_a, beta):
    B, L, D = w.shape
    image_size = x.shape[2] * x.shape[3]
    G = gt.T                                                     # [L*D, C*H*W]

    def output_fn(w_):
        x_ = (w_.reshape(B, L * D) @ G).reshape(x.shape)
        return jnp.sum(x_ * y) / math.sqrt(image_size)

    grads = jax.grad(output_fn)(w)                               # [B, L, D]
    norm = jnp.sqrt(jnp.mean(jnp.sum(grads ** 2, axis=2), axis=1))
    if float(steps) > 0:
        a = exp_sum_a / (1.0 - beta ** float(steps))
        loss = jnp.mean((norm - a) ** 2)
    else:
        loss = jnp.float32(0.0)
    mean = jnp.mean(norm)
    new_exp = beta * exp_sum_a + (1.0 - beta) * mean
    return loss, new_exp, jnp.float32(steps) + 1.0


if __name__ == "__main__":
    B, L, D = 2, 8, 32          # w: [batch, num_layers, d_latent]
    C, H, W = 4, 16, 16         # x: NCHW
    BETA = 0.99

    key = jax.random.PRNGKey(0)
    k_w, k_g, k_y1, k_y2 = jax.random.split(key, 4)

    w = jax.random.normal(k_w, (B, L, D), jnp.float32)
    # deterministic synthetic linear generator weights
    G = jax.random.normal(k_g, (L * D, C * H * W), jnp.float32) / math.sqrt(L * D)
    gt = G.T                                                     # [C*H*W, L*D]
    x = (w.reshape(B, L * D) @ G).reshape(B, C, H, W)            # x = generator(w)

    steps = jnp.float32(0.0)
    exp_sum_a = jnp.float32(0.0)

    # ---- step 1 (steps == 0 -> loss must be 0, EMA/state still updated).
    # block_k=256 + n_splits=2 forces a (2, 4) grid: parallel N-split across
    # cores and a 4-step pipelined K reduction.
    y1 = jax.random.normal(k_y1, x.shape, jnp.float32)
    loss1, exp1, steps1 = path_length_penalty(w, x, y1, gt, steps, exp_sum_a,
                                              beta=BETA, block_k=256, n_splits=2)
    jax.block_until_ready((loss1, exp1, steps1))
    rl1, re1, rs1 = reference(w, x, y1, gt, steps, exp_sum_a, BETA)
    np.testing.assert_allclose(np.asarray(loss1), np.asarray(rl1), rtol=1e-4, atol=1e-5)
    np.testing.assert_allclose(np.asarray(exp1), np.asarray(re1), rtol=1e-4, atol=1e-5)
    np.testing.assert_allclose(np.asarray(steps1), np.asarray(rs1), rtol=0, atol=0)

    # ---- step 2 (steps > 0 -> real path-length penalty), auto block_k / split.
    y2 = jax.random.normal(k_y2, x.shape, jnp.float32)
    loss2, exp2, steps2 = path_length_penalty(w, x, y2, gt, steps1, exp1, beta=BETA)
    jax.block_until_ready((loss2, exp2, steps2))
    rl2, re2, rs2 = reference(w, x, y2, gt, rs1, re1, BETA)
    np.testing.assert_allclose(np.asarray(loss2), np.asarray(rl2), rtol=1e-4, atol=1e-5)
    np.testing.assert_allclose(np.asarray(exp2), np.asarray(re2), rtol=1e-4, atol=1e-5)
    np.testing.assert_allclose(np.asarray(steps2), np.asarray(rs2), rtol=0, atol=0)

    # ---- step 3: bf16 Gt/y stream (halves HBM bytes), f32 accumulation.
    loss3, exp3, _ = path_length_penalty(w, x, y1, gt, steps, exp_sum_a, beta=BETA,
                                         block_k=256, compute_dtype=jnp.bfloat16)
    jax.block_until_ready((loss3, exp3))
    np.testing.assert_allclose(np.asarray(loss3), 0.0, atol=1e-7)   # steps==0 path
    np.testing.assert_allclose(np.asarray(exp3), np.asarray(re1), rtol=2e-2, atol=1e-3)

    print("KERNEL_OK")
</pallas_src>

<mosaic_0001>
module attributes {stable_mosaic.version = 11 : i64} {
  func.func @_plp_kernel(%arg0: i32, %arg1: i32, %arg2: memref<2x256xf32, #tpu.memory_space<vmem>>, %arg3: memref<256x128xf32, #tpu.memory_space<vmem>>, %arg4: memref<1x2x1xf32, #tpu.memory_space<vmem>>, %arg5: memref<2x128xf32, #tpu.memory_space<vmem>>) attributes {dimension_semantics = [#tpu.dimension_semantics<parallel>, #tpu.dimension_semantics<arbitrary>], iteration_bounds = array<i64: 2, 4>, scalar_prefetch = 0 : i64, scratch_operands = 1 : i64, tpu.core_type = #tpu.core_type<tc>, window_params = [{transform_indices = @transform_0, window_bounds = array<i64: 2, 256>}, {transform_indices = @transform_1, window_bounds = array<i64: 256, 128>}, {transform_indices = @transform_2, window_bounds = array<i64: 1, 2, 1>}]} {
    %c0_i32 = arith.constant 0 : i32
    %0 = arith.cmpi eq, %arg1, %c0_i32 : i32
    %1 = arith.extui %0 : i1 to i32
    %c0_i32_0 = arith.constant 0 : i32
    %2 = arith.cmpi ne, %1, %c0_i32_0 : i32
    scf.if %2 {
      %cst_9 = arith.constant 0.000000e+00 : f32
      %12 = vector.broadcast %cst_9 : f32 to vector<2x128xf32>
      %c0_10 = arith.constant 0 : index
      %c0_11 = arith.constant 0 : index
      %13 = vector.load %arg5[%c0_10, %c0_11] : memref<2x128xf32, #tpu.memory_space<vmem>>, vector<2x128xf32>
      tpu.vector_store %arg5[%c0_10, %c0_11], %12 {strides = array<i32>} : memref<2x128xf32, #tpu.memory_space<vmem>>, vector<2x128xf32>,
    } else {
    }
    %c0 = arith.constant 0 : index
    %c0_1 = arith.constant 0 : index
    %3 = vector.load %arg5[%c0, %c0_1] : memref<2x128xf32, #tpu.memory_space<vmem>>, vector<2x128xf32>
    %c0_2 = arith.constant 0 : index
    %c0_3 = arith.constant 0 : index
    %4 = vector.load %arg2[%c0_2, %c0_3] : memref<2x256xf32, #tpu.memory_space<vmem>>, vector<2x256xf32>
    %c0_4 = arith.constant 0 : index
    %c0_5 = arith.constant 0 : index
    %5 = vector.load %arg3[%c0_4, %c0_5] : memref<256x128xf32, #tpu.memory_space<vmem>>, vector<256x128xf32>
    %cst = arith.constant dense<0.000000e+00> : vector<2x128xf32>
    %6 = tpu.matmul %4, %5, %cst {dimension_numbers = #tpu.dot_dimension_numbers<[1], [0], [0], [1], [0, 0, 1, 1], [], []>} : vector<2x256xf32>, vector<256x128xf32>, vector<2x128xf32> -> vector<2x128xf32>
    %7 = arith.addf %3, %6 : vector<2x128xf32>
    %c0_6 = arith.constant 0 : index
    %c0_7 = arith.constant 0 : index
    %8 = vector.load %arg5[%c0_6, %c0_7] : memref<2x128xf32, #tpu.memory_space<vmem>>, vector<2x128xf32>
    tpu.vector_store %arg5[%c0_6, %c0_7], %7 {strides = array<i32>} : memref<2x128xf32, #tpu.memory_space<vmem>>, vector<2x128xf32>,
    %c3_i32 = arith.constant 3 : i32
    %9 = arith.cmpi eq, %arg1, %c3_i32 : i32
    %10 = arith.extui %9 : i1 to i32
    %c0_i32_8 = arith.constant 0 : i32
    %11 = arith.cmpi ne, %10, %c0_i32_8 : i32
    scf.if %11 {
      %c0_9 = arith.constant 0 : index
      %c0_10 = arith.constant 0 : index
      %12 = vector.load %arg5[%c0_9, %c0_10] : memref<2x128xf32, #tpu.memory_space<vmem>>, vector<2x128xf32>
      %13 = arith.mulf %12, %12 : vector<2x128xf32>
      %cst_11 = arith.constant dense<0.000000e+00> : vector<2xf32>
      %14 = vector.multi_reduction <add>, %13, %cst_11 [1] : vector<2x128xf32> to vector<2xf32>
      %15 = vector.shape_cast %14 : vector<2xf32> to vector<2x1xf32>
      %c0_12 = arith.constant 0 : index
      %c0_13 = arith.constant 0 : index
      %c0_14 = arith.constant 0 : index
      %16 = vector.load %arg4[%c0_12, %c0_13, %c0_14] : memref<1x2x1xf32, #tpu.memory_space<vmem>>, vector<1x2x1xf32>
      %17 = vector.shape_cast %16 : vector<1x2x1xf32> to vector<2x1xf32>
      %18 = vector.shape_cast %15 : vector<2x1xf32> to vector<1x2x1xf32>
      tpu.vector_store %arg4[%c0_12, %c0_13, %c0_14], %18 {strides = array<i32>} : memref<1x2x1xf32, #tpu.memory_space<vmem>>, vector<1x2x1xf32>,
    } else {
    }
    return
  }
  func.func @transform_0(%arg0: i32, %arg1: i32) -> (i32, i32) {
    %c0_i32 = arith.constant 0 : i32
    %c0_i32_0 = arith.constant 0 : i32
    return %c0_i32, %arg1 : i32, i32
  }
  func.func @transform_1(%arg0: i32, %arg1: i32) -> (i32, i32) {
    %c0_i32 = arith.constant 0 : i32
    return %arg1, %arg0 : i32, i32
  }
  func.func @transform_2(%arg0: i32, %arg1: i32) -> (i32, i32, i32) {
    %c0_i32 = arith.constant 0 : i32
    %c0_i32_0 = arith.constant 0 : i32
    %c0_i32_1 = arith.constant 0 : i32
    return %arg0, %c0_i32, %c0_i32_0 : i32, i32, i32
  }
}

</mosaic_0001>

<llo_original>
// kernel: tpu_custom_call.1
$region0: #{tpu_custom_call.1}
  #allocation0 [shape = 'u32[]', space=smem, size = 0x4, offset = 0x4, fixed_abs, tag = 'smem constant byte address 0x4 - core index']
  #allocation1 [shape = 'u32[144,128]{1,0:T(1,128)}', space=vmem, size = 0x12000, scoped, tag = 'internal scratch']
  #allocation2 [shape = 'f32[2,128]{1,0:T(2,128)}', space=vmem, size = 0x400, scoped, tag = 'scratch operand']
  %s0 = inlined_call_operand.hbm [shape: f32[2,1024], index: 0, kind: input, shape index: {}]
  %s1 = inlined_call_operand.hbm [shape: f32[1024,256], index: 1, kind: input, shape index: {}]
  %s2 = inlined_call_operand.vmem [shape: f32[2,2,1], index: 2, kind: output, shape index: {}]
  %s3 = sld [smem:[#allocation0]]
  $region57: #{tpu_custom_call.1} parent=0
    _
  %s5 = ssub.s32 1, %s3
  %s6 = scalar_select 0, %s5, %s3
  $region1: #{tpu_custom_call.1} parent=0
    #allocation3 [shape = 'u8[4096]{0}', space=vmem, size = 0x1000, scoped, tag = 'input window, operand 0']
    #allocation4 [shape = 's32[2]{0}', space=sflag, size = 0x8, scoped, tag = 'scoped memory for tpu_custom_call.1']
    #allocation5 [shape = 'u8[262144]{0}', space=vmem, size = 0x40000, scoped, tag = 'input window, operand 1']
    #allocation6 [shape = 's32[2]{0}', space=sflag, size = 0x8, scoped, tag = 'scoped memory for tpu_custom_call.1']
    %7 = vsyncpa [#allocation4], 0
    %s8 = scalar_lea.sflag [#allocation4], 1
    %9 = vsyncpa %s8, 0
    %10 = vsyncpa [#allocation6], 0
    %s11 = scalar_lea.sflag [#allocation6], 1
    %12 = vsyncpa %s11, 0
    loop: start=0, step=1, limit=10
    $region2: #{tpu_custom_call.1} parent=1 // loop_pre_header
      _
    $region3: #{tpu_custom_call.1} parent=1 // loop_header
      %s14 = sphi 0, %s18
      %p15 = scmp.ge.s32.totalorder %s14, 10
      %s21 = sphi 0, %s33
      %s22 = sphi 0, %s29
      %s23 = sphi 0, %s21
      %s24 = sphi 0, %s22
      %s25 = sphi 0, %s23
      %s26 = sphi 0, %s24
      %s36 = sphi 0, %s38
      %s39 = sphi 0, %s36
      %s40 = sphi 0, %s39
      %s56 = sphi 0, %s40
      %s64 = sphi 0, %s66
      %s67 = sphi 0, %s64
      %s68 = sphi 0, %s67
      %s84 = sphi 0, %s68
      %s90 = sphi 0, %s92
      %s93 = sphi 0, %s90
      %s94 = sphi 0, %s93
      %s110 = sphi 0, %s94
    $region4: #{tpu_custom_call.1} parent=1 // loop_header_branch
      %17 = sbr.rel (%p15) target = $region8
    $region5: #{tpu_custom_call.1} parent=1 // loop_body
      %s19 = ssub.s32 %s14, 1
      %s20 = ssub.s32 %s14, 2
      %s27 = sadd.s32 1, %s22
      %p28 = scmp.ge.s32.totalorder %s27, 4
      %s29 = scalar_select %p28, 0, %s27
      %s30 = sadd.s32 1, %s21
      %s31 = scalar_select %p28, %s30, %s21
      %p32 = scmp.ge.s32.totalorder %s31, 2
      %s33 = scalar_select %p32, 0, %s31
      %s34 = ssub.s32 %s22, %s29
      %p35 = scmp.eq.s32.totalorder %s34, 0
      %s37 = sadd.s32 %s36, 1
      %s38 = scalar_select %p35, %s36, %s37
      %p41 = pneg %p35
      %p42 = scmp.eq.s32.totalorder %s14, 7
      %p43 = por %p41, %p42
      %p44 = scmp.ne.s32.totalorder %s36, %s39
      %p45 = scmp.eq.s32.totalorder %s14, 0
      %p46 = por %p44, %p45
      %p47 = scmp.ne.s32.totalorder %s36, %s39
      %p48 = scmp.eq.s32.totalorder %s19, 7
      %p49 = por %p47, %p48
      %p50 = scmp.ne.s32.totalorder %s39, %s40
      %p51 = scmp.eq.s32.totalorder %s19, 0
      %p52 = por %p50, %p51
      %p53 = scmp.ne.s32.totalorder %s39, %s40
      %p54 = scmp.eq.s32.totalorder %s20, 7
      %p55 = por %p53, %p54
      %p57 = scmp.ne.s32.totalorder %s40, %s56
      %p58 = scmp.eq.s32.totalorder %s20, 0
      %p59 = por %p57, %p58
      %s60 = ssub.s32 %s22, %s29
      %s61 = ssub.s32 %s21, %s33
      %s62 = sor.u32 %s60, %s61
      %p63 = scmp.eq.s32.totalorder %s62, 0
      %s65 = sadd.s32 %s64, 1
      %s66 = scalar_select %p63, %s64, %s65
      %p69 = pneg %p63
      %p70 = scmp.eq.s32.totalorder %s14, 7
      %p71 = por %p69, %p70
      %p72 = scmp.ne.s32.totalorder %s64, %s67
      %p73 = scmp.eq.s32.totalorder %s14, 0
      %p74 = por %p72, %p73
      %p75 = scmp.ne.s32.totalorder %s64, %s67
      %p76 = scmp.eq.s32.totalorder %s19, 7
      %p77 = por %p75, %p76
      %p78 = scmp.ne.s32.totalorder %s67, %s68
      %p79 = scmp.eq.s32.totalorder %s19, 0
      %p80 = por %p78, %p79
      %p81 = scmp.ne.s32.totalorder %s67, %s68
      %p82 = scmp.eq.s32.totalorder %s20, 7
      %p83 = por %p81, %p82
      %p85 = scmp.ne.s32.totalorder %s68, %s84
      %p86 = scmp.eq.s32.totalorder %s20, 0
      %p87 = por %p85, %p86
      %s88 = ssub.s32 %s21, %s33
      %p89 = scmp.eq.s32.totalorder %s88, 0
      %s91 = sadd.s32 %s90, 1
      %s92 = scalar_select %p89, %s90, %s91
      %p95 = pneg %p89
      %p96 = scmp.eq.s32.totalorder %s14, 7
      %p97 = por %p95, %p96
      %p98 = scmp.ne.s32.totalorder %s90, %s93
      %p99 = scmp.eq.s32.totalorder %s14, 0
      %p100 = por %p98, %p99
      %p101 = scmp.ne.s32.totalorder %s90, %s93
      %p102 = scmp.eq.s32.totalorder %s19, 7
      %p103 = por %p101, %p102
      %p104 = scmp.ne.s32.totalorder %s93, %s94
      %p105 = scmp.eq.s32.totalorder %s19, 0
      %p106 = por %p104, %p105
      %p107 = scmp.ne.s32.totalorder %s93, %s94
      %p108 = scmp.eq.s32.totalorder %s20, 7
      %p109 = por %p107, %p108
      %p111 = scmp.ne.s32.totalorder %s94, %s110
      %p112 = scmp.eq.s32.totalorder %s20, 0
      %p113 = por %p111, %p112
      %p114 = scmp.le.s32.totalorder 1, %s14
      %p115 = scmp.lt.s32.totalorder %s14, 9
      %p116 = pnand %p114, %p115
      %p117 = pneg %p116
      // Predicated region
      $region9: #{tpu_custom_call.1} parent=5 // pred_check
        _
      $region10: #{tpu_custom_call.1} parent=5 // pred_check_branch
        %119 = sbr.rel (%p116) target = $region12
      $region11: #{tpu_custom_call.1} parent=5 // pred_region
        %s120 = ssub.s32 %s14, 1
      $region12: #{tpu_custom_call.1} parent=5 // pred_fallthru
        _
      %p121 = scmp.lt.s32.totalorder %s14, 8
      // Predicated region
      $region13: #{tpu_custom_call.1} parent=5 // pred_check
        %p122 = pneg %p121
      $region14: #{tpu_custom_call.1} parent=5 // pred_check_branch
        %124 = sbr.rel (%p122) target = $region16
      $region15: #{tpu_custom_call.1} parent=5 // pred_region
        // Predicated region
        $region17: #{tpu_custom_call.1} parent=15 // pred_check
          %p125 = pneg %p46
        $region18: #{tpu_custom_call.1} parent=15 // pred_check_branch
          %127 = sbr.rel (%p125) target = $region20
        $region19: #{tpu_custom_call.1} parent=15 // pred_region
          %s128 = sand.u32 %s36, 1
          %s129 = scalar_lea.sflag [#allocation4], %s128
          %s130 = sand.u32 %s36, 1
          %s131 = smul.addr %s130, 4
          %s132 = scalar_lea.vmem [#allocation3], %s131
          %s133 = smul.u32 2, %s22
          %s135 = ssub.s32 64, 64
          %136 = vsyncadd %s129, %s135
          %s137 = smul.addr %s133, 32
          %s138 = scalar_lea.hbm %s0, %s137
          %s140 = sshll.u32 %s132, 4
          %s141 = int_to_ptr.vmem [resolvable:$true] %s140
          %143 = dma.hbm_to_vmem [thread:$0]  %s138, 64, %s141, %s129
        $region20: #{tpu_custom_call.1} parent=15 // pred_fallthru
          _
        // Predicated region
        $region21: #{tpu_custom_call.1} parent=15 // pred_check
          %p144 = pneg %p74
        $region22: #{tpu_custom_call.1} parent=15 // pred_check_branch
          %146 = sbr.rel (%p144) target = $region24
        $region23: #{tpu_custom_call.1} parent=15 // pred_region
          %s147 = sand.u32 %s64, 1
          %s148 = scalar_lea.sflag [#allocation6], %s147
          %s149 = sand.u32 %s64, 1
          %s150 = smul.addr %s149, 256
          %s151 = scalar_lea.vmem [#allocation5], %s150
          %s152 = smul.u32 32, %s22
          %s154 = ssub.s32 4096, 4096
          %155 = vsyncadd %s148, %s154
          %s156 = smul.addr %s152, 2
          %s157 = sadd.s32 %s21, %s156
          %s158 = smul.addr %s157, 128
          %s159 = scalar_lea.hbm %s1, %s158
          %s160 = sshll.u32 %s151, 4
          %s161 = int_to_ptr.vmem [resolvable:$true] %s160
          %166 = dma.hbm_to_vmem [thread:$0]  %s159, 4096, %s161, %s148, 256, 128, 8
        $region24: #{tpu_custom_call.1} parent=15 // pred_fallthru
          _
      $region16: #{tpu_custom_call.1} parent=5 // pred_fallthru
        _
      %p167 = scmp.le.s32.totalorder 1, %s14
      %p168 = scmp.lt.s32.totalorder %s14, 9
      %p169 = pnand %p167, %p168
      %p170 = pneg %p169
      // Predicated region
      $region25: #{tpu_custom_call.1} parent=5 // pred_check
        _
      $region26: #{tpu_custom_call.1} parent=5 // pred_check_branch
        %172 = sbr.rel (%p169) target = $region28
      $region27: #{tpu_custom_call.1} parent=5 // pred_region
        %s173 = ssub.s32 %s14, 1
        %s174 = sand.u32 %s39, 1
        %s175 = scalar_lea.sflag [#allocation4], %s174
        %s176 = sand.u32 %s39, 1
        %s177 = smul.addr %s176, 4
        %s178 = scalar_lea.vmem [#allocation3], %s177
        // Predicated region
        $region29: #{tpu_custom_call.1} parent=27 // pred_check
          %p179 = pneg %p52
        $region30: #{tpu_custom_call.1} parent=27 // pred_check_branch
          %181 = sbr.rel (%p179) target = $region32
        $region31: #{tpu_custom_call.1} parent=27 // pred_region
          %182 = dma.done %s175, 64
        $region32: #{tpu_custom_call.1} parent=27 // pred_fallthru
          _
        %s183 = sand.u32 %s67, 1
        %s184 = scalar_lea.sflag [#allocation6], %s183
        %s185 = sand.u32 %s67, 1
        %s186 = smul.addr %s185, 256
        %s187 = scalar_lea.vmem [#allocation5], %s186
        // Predicated region
        $region33: #{tpu_custom_call.1} parent=27 // pred_check
          %p188 = pneg %p80
        $region34: #{tpu_custom_call.1} parent=27 // pred_check_branch
          %190 = sbr.rel (%p188) target = $region36
        $region35: #{tpu_custom_call.1} parent=27 // pred_region
          %191 = dma.done %s184, 4096
        $region36: #{tpu_custom_call.1} parent=27 // pred_fallthru
          _
        %s192 = sand.u32 %s39, 1
        %s193 = scalar_lea.sflag [#allocation4], %s192
        %s194 = sand.u32 %s39, 1
        %s195 = smul.addr %s194, 4
        %s196 = scalar_lea.vmem [#allocation3], %s195
        %p197 = pneg %p52
        %p198 = pneg %p49
        %s199 = sand.u32 %s67, 1
        %s200 = scalar_lea.sflag [#allocation6], %s199
        %s201 = sand.u32 %s67, 1
        %s202 = smul.addr %s201, 256
        %s203 = scalar_lea.vmem [#allocation5], %s202
        %p204 = pneg %p80
        %p205 = pneg %p77
        %p206 = pneg %p106
        %p207 = pneg %p103
        %p208 = scmp.lt.s32.totalorder %s23, 1
        %s209 = scalar_select %p208, %s23, 1
        %s210 = smul.addr %s209, 2
        %s211 = scalar_lea.vmem %s2, %s210
        %s212 = smul.u32 2, %s24
        %s213 = smul.u32 32, %s24
        %p214 = scmp.lt.s32.totalorder %s23, 1
        %s215 = scalar_select %p214, %s23, 1
        %s216 = smul.addr %s215, 2
        %s217 = scalar_lea.vmem %s2, %s216
        %p218 = scmp.eq.s32.totalorder %s24, 0
        // Predicated region
        $region37: #{tpu_custom_call.1} parent=27 // pred_check
          %p219 = pneg %p218
        $region38: #{tpu_custom_call.1} parent=27 // pred_check_branch
          %221 = sbr.rel (%p219) target = $region40
        $region39: #{tpu_custom_call.1} parent=27 // pred_region
          %222 = vst [vmem:[#allocation2] sm:$0x3] 0.0
        $region40: #{tpu_custom_call.1} parent=27 // pred_fallthru
          _
        %v223 = vld [vmem:[#allocation2] sm:$0x3]
        %v224 = vld [vmem:[%s178] sm:$0xf]
        %v225 = vld [vmem:[%s187] sm:$0xff]
        %v226 = vld [vmem:[%s187 + $0x8] sm:$0xff]
        %v227 = vld [vmem:[%s187 + $0x10] sm:$0xff]
        %v228 = vld [vmem:[%s187 + $0x18] sm:$0xff]
        %v229 = vld [vmem:[%s187 + $0x20] sm:$0xff]
        %v230 = vld [vmem:[%s187 + $0x28] sm:$0xff]
        %v231 = vld [vmem:[%s187 + $0x30] sm:$0xff]
        %v232 = vld [vmem:[%s187 + $0x38] sm:$0xff]
        %v233 = vld [vmem:[%s187 + $0x40] sm:$0xff]
        %v234 = vld [vmem:[%s187 + $0x48] sm:$0xff]
        %v235 = vld [vmem:[%s187 + $0x50] sm:$0xff]
        %v236 = vld [vmem:[%s187 + $0x58] sm:$0xff]
        %v237 = vld [vmem:[%s187 + $0x60] sm:$0xff]
        %v238 = vld [vmem:[%s187 + $0x68] sm:$0xff]
        %v239 = vld [vmem:[%s187 + $0x70] sm:$0xff]
        %v240 = vld [vmem:[%s187 + $0x78] sm:$0xff]
        %v241 = vld [vmem:[%s187 + $0x80] sm:$0xff]
        %v242 = vld [vmem:[%s187 + $0x88] sm:$0xff]
        %v243 = vld [vmem:[%s187 + $0x90] sm:$0xff]
        %v244 = vld [vmem:[%s187 + $0x98] sm:$0xff]
        %v245 = vld [vmem:[%s187 + $0xa0] sm:$0xff]
        %v246 = vld [vmem:[%s187 + $0xa8] sm:$0xff]
        %v247 = vld [vmem:[%s187 + $0xb0] sm:$0xff]
        %v248 = vld [vmem:[%s187 + $0xb8] sm:$0xff]
        %v249 = vld [vmem:[%s187 + $0xc0] sm:$0xff]
        %v250 = vld [vmem:[%s187 + $0xc8] sm:$0xff]
        %v251 = vld [vmem:[%s187 + $0xd0] sm:$0xff]
        %v252 = vld [vmem:[%s187 + $0xd8] sm:$0xff]
        %v253 = vld [vmem:[%s187 + $0xe0] sm:$0xff]
        %v254 = vld [vmem:[%s187 + $0xe8] sm:$0xff]
        %v255 = vld [vmem:[%s187 + $0xf0] sm:$0xff]
        %v256 = vld [vmem:[%s187 + $0xf8] sm:$0xff]
        %v259 = vunpack.c.l.s4 1983009808
        %v260 = vunpack.c.0.s8 %v259
        %v261 = vlaneseq
        %v262 = vshrl.u32 %v261, 7
        %v263 = vsub.s32 %v260, %v262
        %v264 = vrot.slane %v224, %v263
        %v265 = vcombine.high %v264, %v264
        %268 = vmatprep.subr.mxu0 0.0
        %269 = vmatpush1.msra.mxu0 %v225
        %270 = vmatprep.subr.mxu0 0.0
        %271 = vmatpush1.msra.mxu0 %v226
        %272 = vmatprep.subr.mxu0 0.0
        %273 = vmatpush1.msra.mxu0 %v227
        %274 = vmatprep.subr.mxu0 0.0
        %275 = vmatpush1.msra.mxu0 %v228
        %276 = vmatprep.subr.mxu0 0.0
        %277 = vmatpush1.msra.mxu0 %v229
        %278 = vmatprep.subr.mxu0 0.0
        %279 = vmatpush1.msra.mxu0 %v230
        %280 = vmatprep.subr.mxu0 0.0
        %281 = vmatpush1.msra.mxu0 %v231
        %282 = vmatprep.subr.mxu0 0.0
        %283 = vmatpush1.msra.mxu0 %v232
        %284 = vmatprep.subr.mxu0 0.0
        %285 = vmatpush1.msra.mxu0 %v233
        %286 = vmatprep.subr.mxu0 0.0
        %287 = vmatpush1.msra.mxu0 %v234
        %288 = vmatprep.subr.mxu0 0.0
        %289 = vmatpush1.msra.mxu0 %v235
        %290 = vmatprep.subr.mxu0 0.0
        %291 = vmatpush1.msra.mxu0 %v236
        %292 = vmatprep.subr.mxu0 0.0
        %293 = vmatpush1.msra.mxu0 %v237
        %294 = vmatprep.subr.mxu0 0.0
        %295 = vmatpush1.msra.mxu0 %v238
        %296 = vmatprep.subr.mxu0 0.0
        %297 = vmatpush1.msra.mxu0 %v239
        %298 = vmatprep.subr.mxu0 0.0
        %299 = vmatpush1.msra.mxu0 %v240
        %300 = vmatprep.subr.mxu0 0.0
        %301 = vmatpush1.msra.mxu0 %v241
        %302 = vmatprep.subr.mxu0 0.0
        %303 = vmatpush1.msra.mxu0 %v242
        %304 = vmatprep.subr.mxu0 0.0
        %305 = vmatpush1.msra.mxu0 %v243
        %306 = vmatprep.subr.mxu0 0.0
        %307 = vmatpush1.msra.mxu0 %v244
        %308 = vmatprep.subr.mxu0 0.0
        %309 = vmatpush1.msra.mxu0 %v245
        %310 = vmatprep.subr.mxu0 0.0
        %311 = vmatpush1.msra.mxu0 %v246
        %312 = vmatprep.subr.mxu0 0.0
        %313 = vmatpush1.msra.mxu0 %v247
        %314 = vmatprep.subr.mxu0 0.0
        %315 = vmatpush1.msra.mxu0 %v248
        %316 = vmatprep.subr.mxu0 0.0
        %317 = vmatpush1.msra.mxu0 %v249
        %318 = vmatprep.subr.mxu0 0.0
        %319 = vmatpush1.msra.mxu0 %v250
        %320 = vmatprep.subr.mxu0 0.0
        %321 = vmatpush1.msra.mxu0 %v251
        %322 = vmatprep.subr.mxu0 0.0
        %323 = vmatpush1.msra.mxu0 %v252
        %324 = vmatprep.subr.mxu0 0.0
        %325 = vmatpush1.msra.mxu0 %v253
        %326 = vmatprep.subr.mxu0 0.0
        %327 = vmatpush1.msra.mxu0 %v254
        %328 = vmatprep.subr.mxu0 0.0
        %329 = vmatpush1.msra.mxu0 %v255
        %330 = vmatprep.subr.mxu0 0.0
        %331 = vmatpush1.msra.mxu0 %v256
        %332 = vmatprep.mubr.f32.mxu0 %v265
        %333 = vmatmul.mubr.f32.gmra.mrb[0].mxu0 %v264
        %v334 = vpop.f32.mrb[0].mxu0
        %v335 = vadd.f32 0.0, %v334
        %v336 = vpop.f32.mrb[0].mxu0
        %337 = vdwg.mxu0
        %v338 = vadd.f32 %v223, %v335
        %339 = vst [vmem:[#allocation2] sm:$0x3] %v338
        %p340 = scmp.eq.s32.totalorder %s24, 3
        // Predicated region
        $region41: #{tpu_custom_call.1} parent=27 // pred_check
          %p341 = pneg %p340
        $region42: #{tpu_custom_call.1} parent=27 // pred_check_branch
          %343 = sbr.rel (%p341) target = $region44
        $region43: #{tpu_custom_call.1} parent=27 // pred_region
          %v344 = vld [vmem:[#allocation2] sm:$0x3]
          %v345 = vmul.f32 %v344, %v344
          %vm346 = vcmask 1041408
          %v347 = vsel %vm346, %v345, 0.0
          %348 = vadd.xlane.f32.xlu0 %v347
          %v349 = vpop.xlane.xlu0 %348
          %vm350 = vcmask 1024
          %351 = vst.msk [vmem:[%s217] sm:$0x3] %vm350, %v349
        $region44: #{tpu_custom_call.1} parent=27 // pred_fallthru
          _
        %p352 = scmp.lt.s32.totalorder %s23, 1
        %s353 = scalar_select %p352, %s23, 1
        %s354 = smul.addr %s353, 2
        %s355 = scalar_lea.vmem %s2, %s354
        // Predicated region
        $region45: #{tpu_custom_call.1} parent=27 // pred_check
          %p356 = pneg %p103
        $region46: #{tpu_custom_call.1} parent=27 // pred_check_branch
          %358 = sbr.rel (%p356) target = $region48
        $region47: #{tpu_custom_call.1} parent=27 // pred_region
          _
        $region48: #{tpu_custom_call.1} parent=27 // pred_fallthru
          _
      $region28: #{tpu_custom_call.1} parent=5 // pred_fallthru
        _
      %p359 = scmp.le.s32.totalorder 2, %s14
      // Predicated region
      $region49: #{tpu_custom_call.1} parent=5 // pred_check
        %p360 = pneg %p359
      $region50: #{tpu_custom_call.1} parent=5 // pred_check_branch
        %362 = sbr.rel (%p360) target = $region52
      $region51: #{tpu_custom_call.1} parent=5 // pred_region
        %s363 = ssub.s32 %s14, 2
        // Predicated region
        $region53: #{tpu_custom_call.1} parent=51 // pred_check
          %p364 = pneg %p109
        $region54: #{tpu_custom_call.1} parent=51 // pred_check_branch
          %366 = sbr.rel (%p364) target = $region56
        $region55: #{tpu_custom_call.1} parent=51 // pred_region
          %p367 = scmp.lt.s32.totalorder %s25, 1
          %s368 = scalar_select %p367, %s25, 1
          %s369 = smul.addr %s368, 2
          %s370 = scalar_lea.vmem %s2, %s369
        $region56: #{tpu_custom_call.1} parent=51 // pred_fallthru
          _
      $region52: #{tpu_custom_call.1} parent=5 // pred_fallthru
        _
    $region6: #{tpu_custom_call.1} parent=1 // loop_footer
      %s18 = sadd.s32 1, %s14
    $region7: #{tpu_custom_call.1} parent=1 // loop_footer_branch
      %13 = sbr.rel target = $region3
    $region8: #{tpu_custom_call.1} parent=1 // loop_exit
      _
    %371 = vsyncpa [#allocation4], 1
    %s372 = scalar_lea.sflag [#allocation4], 1
    %373 = vsyncpa %s372, 1
    %374 = vsyncpa [#allocation6], 1
    %s375 = scalar_lea.sflag [#allocation6], 1
    %376 = vsyncpa %s375, 1

</llo_original>
